<compile_context>
chip_gen: v7x
topology: tpu7x:2x2x1
jax: 0.10.0
libtpu: 0.0.40
codegen_flags: <defaults>
</compile_context>

<pallas_src>
from typing import NamedTuple

import numpy as np
import jax
import jax.numpy as jnp
from jax.experimental import pallas as pl
from jax.experimental.pallas import tpu as pltpu


class ResidueState(NamedTuple):
    coords: jnp.ndarray    # (N, 3)
    features: jnp.ndarray  # (N, Cs + 3*Cv)


def _round_up(x: int, m: int) -> int:
    return ((x + m - 1) // m) * m


def _cdiv(a: int, b: int) -> int:
    return -(-a // b)


# ---------------------------------------------------------------------------
# Wrapper-side glue: ragged atom-wise data -> padded per-residue layout.
# ---------------------------------------------------------------------------
def pack_residues(residue_index, residue_index_atomwise, relative_coords,
                  atom_code_index, atom_type_index, pad_length):
    # TODO(synk): this ragged->padded packing mirrors the per-residue Python
    # loop in the reference forward(); it is host/wrapper-side glue (O(A^2)
    # rank computation) and assumes residue_index == arange(num_residues).
    n_res = residue_index.shape[0]
    n_atoms = residue_index_atomwise.shape[0]
    row = residue_index_atomwise.astype(jnp.int32)
    same = residue_index_atomwise[:, None] == residue_index_atomwise[None, :]
    before = jnp.tril(jnp.ones((n_atoms, n_atoms), dtype=bool), k=-1)
    pos = jnp.sum(jnp.logical_and(same, before), axis=1).astype(jnp.int32)

    mask = jnp.zeros((n_res, pad_length), jnp.float32).at[row, pos].set(1.0)
    codes = jnp.zeros((n_res, pad_length), jnp.int32).at[row, pos].set(
        atom_code_index.astype(jnp.int32))
    types = jnp.zeros((n_res, pad_length), jnp.int32).at[row, pos].set(
        atom_type_index.astype(jnp.int32))
    rel = jnp.zeros((n_res, pad_length, 3), jnp.float32).at[row, pos].set(
        relative_coords.astype(jnp.float32))
    return mask, codes, types, rel.reshape(n_res, pad_length * 3)


# ---------------------------------------------------------------------------
# The fused Pallas kernel: concatenated-vocab one-hot -> single MXU matmul
# (+ 1e coord matmul into disjoint output columns) -> one full-width store.
# ---------------------------------------------------------------------------
def _initial_residue_embedding_kernel(gidx_ref, rel_ref, w0_ref, w1_ref, out_ref):
    T, S = gidx_ref.shape          # S = 2 + 2*P index slots
    K0 = w0_ref.shape[0]           # concatenated (padded) vocab axis

    gidx = gidx_ref[...]                                        # (T, S) int32
    lane = jax.lax.broadcasted_iota(jnp.int32, (T, K0), 1)      # hoisted once

    # One (T, K0) one-hot for ALL vocab blocks: each slot's index already
    # carries its block offset (added host-side), so slots hit disjoint lanes.
    oh = (gidx[:, 0:1] == lane).astype(jnp.float32)
    for s in range(1, S):                                       # S is small, static
        oh = oh + (gidx[:, s:s + 1] == lane).astype(jnp.float32)

    # Scalar (0e) path: one dense matmul keeps the MXU fed; accumulation of all
    # vocab blocks happens inside the MXU instead of on the VPU.
    acc = jnp.dot(oh.astype(jnp.bfloat16), w0_ref[...],
                  preferred_element_type=jnp.float32)
    # Vector (1e) path: flattened coords @ kron(W_1e, I3); its weight occupies
    # the output columns the scalar weight leaves zero, so one add fuses them.
    acc = acc + jnp.dot(rel_ref[...].astype(jnp.bfloat16), w1_ref[...],
                        preferred_element_type=jnp.float32)

    out_ref[...] = acc.astype(out_ref.dtype)                    # single 128-lane store


# ---------------------------------------------------------------------------
# Module wrapper.
# ---------------------------------------------------------------------------
class InitialResidueEmbeddingPallas:
    """InitialResidueEmbedding with irreps_out = f"{Cs}x0e + {Cv}x1e"."""

    def __init__(self, *, num_scalars_out, num_vectors_out,
                 atom_code_vocab, atom_type_vocab, residue_code_vocab,
                 atom_code_embedding_dim, atom_type_embedding_dim,
                 residue_code_embedding_dim, residue_index_embedding_dim,
                 max_sequence_length, residue_pad_length, key,
                 tile_rows=512, min_grid_steps=2):
        self.num_scalars_out = int(num_scalars_out)
        self.num_vectors_out = int(num_vectors_out)
        self.residue_pad_length = int(residue_pad_length)
        self.tile_rows = int(tile_rows)
        self.min_grid_steps = int(min_grid_steps)

        P = self.residue_pad_length
        Cs, Cv = self.num_scalars_out, self.num_vectors_out
        self.out_dim = Cs + 3 * Cv

        D_ac, D_at = atom_code_embedding_dim, atom_type_embedding_dim
        D_rc, D_ri = residue_code_embedding_dim, residue_index_embedding_dim
        V_ac, V_at = atom_code_vocab, atom_type_vocab
        V_rc, V_ri = residue_code_vocab, max_sequence_length
        s0_in = P * D_ac + P * D_at + D_rc + D_ri
        self.s0_in = s0_in
        self.V_ac, self.V_at = V_ac, V_at

        # Concatenated-vocab column layout (offsets baked into host-side indices).
        self.off_rc = 0
        self.off_ri = V_rc
        self.off_ac = V_rc + V_ri
        self.off_at = self.off_ac + P * V_ac
        k0 = self.off_at + P * V_at
        self.k0_pad = _round_up(k0, 128)

        ks = jax.random.split(key, 6)
        # nn.Embedding default init: N(0, 1)
        self.ac_table = jax.random.normal(ks[0], (V_ac, D_ac), jnp.float32)
        self.at_table = jax.random.normal(ks[1], (V_at, D_at), jnp.float32)
        self.rc_table = jax.random.normal(ks[2], (V_rc, D_rc), jnp.float32)
        self.ri_table = jax.random.normal(ks[3], (V_ri, D_ri), jnp.float32)
        # e3nn.o3.Linear weights ~ N(0,1); 1/sqrt(fan_in) normalization folded in.
        self.w0 = jax.random.normal(ks[4], (s0_in, Cs), jnp.float32)
        self.w1 = jax.random.normal(ks[5], (P, Cv), jnp.float32)

        # --- fold embedding tables + block-diagonal Linear into two weights ---
        hi = jax.lax.Precision.HIGHEST
        w0n = self.w0 / np.sqrt(s0_in)
        w_big0 = jnp.zeros((self.k0_pad, self.out_dim), jnp.float32)
        off = 0
        for p in range(P):
            blk = jnp.dot(self.ac_table, w0n[off:off + D_ac], precision=hi)
            blk = blk.at[0].set(0.0)           # index 0 = padding slot -> mask folded in
            w_big0 = w_big0.at[self.off_ac + p * V_ac:
                               self.off_ac + (p + 1) * V_ac, :Cs].set(blk)
            off += D_ac
        for p in range(P):
            blk = jnp.dot(self.at_table, w0n[off:off + D_at], precision=hi)
            blk = blk.at[0].set(0.0)
            w_big0 = w_big0.at[self.off_at + p * V_at:
                               self.off_at + (p + 1) * V_at, :Cs].set(blk)
            off += D_at
        w_big0 = w_big0.at[self.off_rc:self.off_rc + V_rc, :Cs].set(
            jnp.dot(self.rc_table, w0n[off:off + D_rc], precision=hi))
        off += D_rc
        w_big0 = w_big0.at[self.off_ri:self.off_ri + V_ri, :Cs].set(
            jnp.dot(self.ri_table, w0n[off:off + D_ri], precision=hi))
        off += D_ri
        self.w_big0 = w_big0.astype(jnp.bfloat16)      # (K0_pad, Cout) bf16

        # 1e -> 1e block on the flattened (P*3) layout, output cols [Cs:Cs+3Cv].
        w_big1 = jnp.zeros((3 * P, self.out_dim), jnp.float32)
        w_big1 = w_big1.at[:, Cs:Cs + 3 * Cv].set(
            jnp.kron(self.w1, jnp.eye(3, dtype=jnp.float32)) / np.sqrt(P))
        self.w_big1 = w_big1.astype(jnp.bfloat16)      # (3P, Cout) bf16

    # -- host-side index packing (one dense int32 tile, offsets baked in) -----
    def build_global_indices(self, codes_p, types_p, rc_idx, rs_idx):
        n, P = codes_p.shape
        ac_off = self.off_ac + jnp.arange(P, dtype=jnp.int32) * self.V_ac
        at_off = self.off_at + jnp.arange(P, dtype=jnp.int32) * self.V_at
        return jnp.concatenate([
            rc_idx.astype(jnp.int32).reshape(n, 1) + self.off_rc,
            rs_idx.astype(jnp.int32).reshape(n, 1) + self.off_ri,
            codes_p.astype(jnp.int32) + ac_off[None, :],
            types_p.astype(jnp.int32) + at_off[None, :],
        ], axis=1)                                      # (n, 2 + 2P)

    # -- tile geometry: >= min_grid_steps steps (v7x megacore), bounded padding
    def _choose_tile(self, n):
        tile = _round_up(_cdiv(n, self.min_grid_steps), 8)
        return max(8, min(self.tile_rows, tile))

    # -- the pallas_call ------------------------------------------------------
    def _pallas_forward(self, gidx, rel, *, tile):
        n_pad, S = gidx.shape
        p3 = rel.shape[1]
        c_out = self.out_dim
        k0 = self.k0_pad

        grid = (n_pad // tile,)
        row = lambda i: (i, 0)
        full = lambda i: (0, 0)

        flops = 2 * n_pad * c_out * (k0 + p3)
        bytes_accessed = (4 * n_pad * (S + p3 + c_out)
                          + 2 * (self.w_big0.size + self.w_big1.size))

        # NOTE: the grid-invariant weights are full-extent blocks and get
        # double-buffered (2x ~130 KiB here); at much larger real-model sizes
        # they could instead be DMA'd once into a VMEM scratch at step 0.
        return pl.pallas_call(
            _initial_residue_embedding_kernel,
            grid=grid,
            in_specs=[
                pl.BlockSpec((tile, S), row),            # global indices (int32)
                pl.BlockSpec((tile, p3), row),           # padded rel coords (1e)
                pl.BlockSpec(self.w_big0.shape, full),   # folded 0e weight (bf16)
                pl.BlockSpec(self.w_big1.shape, full),   # folded 1e weight (bf16)
            ],
            out_specs=pl.BlockSpec((tile, c_out), row),
            out_shape=jax.ShapeDtypeStruct((n_pad, c_out), jnp.float32),
            compiler_params=pltpu.CompilerParams(
                dimension_semantics=("parallel",),       # row tiles split across TCs
                vmem_limit_bytes=32 * 1024 * 1024),
            cost_estimate=pl.CostEstimate(
                flops=flops, transcendentals=0, bytes_accessed=bytes_accessed),
        )(gidx, rel, self.w_big0, self.w_big1)

    # -- forward --------------------------------------------------------------
    def __call__(self, residue_base_coords, residue_index, residue_index_atomwise,
                 residue_relative_coords, atom_code_index, atom_type_index,
                 residue_code_index, residue_sequence_index) -> ResidueState:
        P = self.residue_pad_length
        n = residue_base_coords.shape[0]

        _, codes_p, types_p, rel_flat = pack_residues(
            residue_index, residue_index_atomwise, residue_relative_coords,
            atom_code_index, atom_type_index, P)
        gidx = self.build_global_indices(codes_p, types_p,
                                         residue_code_index, residue_sequence_index)

        tile = self._choose_tile(n)
        n_pad = _round_up(n, tile)

        def pad_rows(x):
            return jnp.pad(x, [(0, n_pad - n)] + [(0, 0)] * (x.ndim - 1))

        feats = self._pallas_forward(pad_rows(gidx), pad_rows(rel_flat),
                                     tile=tile)[:n]
        return ResidueState(coords=residue_base_coords, features=feats)


# ---------------------------------------------------------------------------
# Pure-JAX f32 reference (embedding -> mask -> concat -> block-diagonal linear).
# ---------------------------------------------------------------------------
def reference_forward(mod, mask, codes_p, types_p, rel_flat,
                      residue_code_index, residue_sequence_index):
    hi = jax.lax.Precision.HIGHEST
    P = mod.residue_pad_length
    n = mask.shape[0]
    ac = mod.ac_table[codes_p] * mask[..., None]
    at = mod.at_table[types_p] * mask[..., None]
    feat0 = jnp.concatenate(
        [ac.reshape(n, -1), at.reshape(n, -1),
         mod.rc_table[residue_code_index], mod.ri_table[residue_sequence_index]],
        axis=-1)
    out0 = jnp.dot(feat0, mod.w0, precision=hi) / np.sqrt(mod.s0_in)
    rel3 = rel_flat.reshape(n, P, 3)
    out1 = jnp.einsum("npk,pu->nuk", rel3, mod.w1, precision=hi) / np.sqrt(P)
    return jnp.concatenate([out0, out1.reshape(n, -1)], axis=-1)


if __name__ == "__main__":
    key = jax.random.PRNGKey(0)
    (k_counts, k_codes, k_types, k_rel,
     k_rescode, k_coords, k_param) = jax.random.split(key, 7)

    # small demo shapes
    N_RES = 16
    PAD = 8
    ATOM_CODE_VOCAB = 40     # len(ResidueMetadata.ATOM_CODES) + 1 (demo value)
    ATOM_TYPE_VOCAB = 6      # len(ResidueMetadata.ATOM_TYPES) + 1 (demo value)
    RESIDUE_CODE_VOCAB = 24  # len(ResidueMetadata.RESIDUE_CODES) + 1 (demo value)
    MAX_SEQ_LEN = 64
    D_AC, D_AT, D_RC, D_RI = 8, 8, 16, 16
    CS_OUT, CV_OUT = 104, 8  # irreps_out = "104x0e + 8x1e" -> 128 lane-dense output

    counts = np.asarray(jax.random.randint(k_counts, (N_RES,), 3, PAD + 1))
    n_atoms = int(counts.sum())
    residue_index = jnp.arange(N_RES, dtype=jnp.int32)
    residue_index_atomwise = jnp.asarray(np.repeat(np.arange(N_RES), counts),
                                         dtype=jnp.int32)
    # real atoms use indices >= 1; index 0 is reserved for padding (precondition
    # for the mask-free folded weights)
    atom_code_index = jax.random.randint(k_codes, (n_atoms,), 1, ATOM_CODE_VOCAB,
                                         dtype=jnp.int32)
    atom_type_index = jax.random.randint(k_types, (n_atoms,), 1, ATOM_TYPE_VOCAB,
                                         dtype=jnp.int32)
    residue_relative_coords = jax.random.normal(k_rel, (n_atoms, 3), jnp.float32)
    residue_code_index = jax.random.randint(k_rescode, (N_RES,), 1, RESIDUE_CODE_VOCAB,
                                            dtype=jnp.int32)
    residue_sequence_index = jnp.arange(N_RES, dtype=jnp.int32)
    residue_base_coords = jax.random.normal(k_coords, (N_RES, 3), jnp.float32)

    module = InitialResidueEmbeddingPallas(
        num_scalars_out=CS_OUT, num_vectors_out=CV_OUT,
        atom_code_vocab=ATOM_CODE_VOCAB, atom_type_vocab=ATOM_TYPE_VOCAB,
        residue_code_vocab=RESIDUE_CODE_VOCAB,
        atom_code_embedding_dim=D_AC, atom_type_embedding_dim=D_AT,
        residue_code_embedding_dim=D_RC, residue_index_embedding_dim=D_RI,
        max_sequence_length=MAX_SEQ_LEN, residue_pad_length=PAD,
        key=k_param, tile_rows=512)   # adaptive tile -> 8 rows, grid=(2,) here

    out_state = module(residue_base_coords, residue_index, residue_index_atomwise,
                       residue_relative_coords, atom_code_index, atom_type_index,
                       residue_code_index, residue_sequence_index)
    jax.block_until_ready(out_state.features)

    assert out_state.features.shape == (N_RES, CS_OUT + 3 * CV_OUT)
    assert out_state.coords.shape == (N_RES, 3)

    # correctness check against the pure-JAX f32 reference (kernel uses bf16
    # folded weights -> ~2^-9 relative weight rounding, hence the 2e-2 bound)
    mask, codes_p, types_p, rel_flat = pack_residues(
        residue_index, residue_index_atomwise, residue_relative_coords,
        atom_code_index, atom_type_index, PAD)
    ref = reference_forward(module, mask, codes_p, types_p, rel_flat,
                            residue_code_index, residue_sequence_index)
    err = float(jnp.max(jnp.abs(out_state.features - ref)))
    assert err < 2e-2, f"max abs err vs reference: {err}"

    print("KERNEL_OK")
</pallas_src>

<mosaic_0001>
module attributes {stable_mosaic.version = 11 : i64} {
  func.func @_initial_residue_embedding_kernel(%arg0: i32, %arg1: memref<8x18xi32, #tpu.memory_space<vmem>>, %arg2: memref<8x24xf32, #tpu.memory_space<vmem>>, %arg3: memref<512x128xbf16, #tpu.memory_space<vmem>>, %arg4: memref<24x128xbf16, #tpu.memory_space<vmem>>, %arg5: memref<8x128xf32, #tpu.memory_space<vmem>>) attributes {dimension_semantics = [#tpu.dimension_semantics<parallel>], iteration_bounds = array<i64: 2>, scalar_prefetch = 0 : i64, scratch_operands = 0 : i64, tpu.core_type = #tpu.core_type<tc>, window_params = [{transform_indices = @transform_0, window_bounds = array<i64: 8, 18>}, {transform_indices = @transform_1, window_bounds = array<i64: 8, 24>}, {pipeline_mode = #tpu.pipeline_mode<synchronous>, transform_indices = @transform_2, window_bounds = array<i64: 512, 128>}, {pipeline_mode = #tpu.pipeline_mode<synchronous>, transform_indices = @transform_3, window_bounds = array<i64: 24, 128>}, {transform_indices = @transform_4, window_bounds = array<i64: 8, 128>}]} {
    %c0 = arith.constant 0 : index
    %c0_0 = arith.constant 0 : index
    %0 = vector.load %arg1[%c0, %c0_0] : memref<8x18xi32, #tpu.memory_space<vmem>>, vector<8x18xi32>
    %1 = tpu.iota {dimensions = array<i32: 1>} : vector<8x512xi32>
    %2 = vector.extract_strided_slice %0 {offsets = [0, 0], sizes = [8, 1], strides = [1, 1]} : vector<8x18xi32> to vector<8x1xi32>
    %3 = vector.broadcast %2 : vector<8x1xi32> to vector<8x512xi32>
    %4 = arith.cmpi eq, %3, %1 : vector<8x512xi32>
    %5 = arith.extui %4 : vector<8x512xi1> to vector<8x512xi32>
    %6 = arith.sitofp %5 : vector<8x512xi32> to vector<8x512xf32>
    %7 = vector.extract_strided_slice %0 {offsets = [0, 1], sizes = [8, 1], strides = [1, 1]} : vector<8x18xi32> to vector<8x1xi32>
    %8 = vector.broadcast %7 : vector<8x1xi32> to vector<8x512xi32>
    %9 = arith.cmpi eq, %8, %1 : vector<8x512xi32>
    %10 = arith.extui %9 : vector<8x512xi1> to vector<8x512xi32>
    %11 = arith.sitofp %10 : vector<8x512xi32> to vector<8x512xf32>
    %12 = arith.addf %6, %11 : vector<8x512xf32>
    %13 = vector.extract_strided_slice %0 {offsets = [0, 2], sizes = [8, 1], strides = [1, 1]} : vector<8x18xi32> to vector<8x1xi32>
    %14 = vector.broadcast %13 : vector<8x1xi32> to vector<8x512xi32>
    %15 = arith.cmpi eq, %14, %1 : vector<8x512xi32>
    %16 = arith.extui %15 : vector<8x512xi1> to vector<8x512xi32>
    %17 = arith.sitofp %16 : vector<8x512xi32> to vector<8x512xf32>
    %18 = arith.addf %12, %17 : vector<8x512xf32>
    %19 = vector.extract_strided_slice %0 {offsets = [0, 3], sizes = [8, 1], strides = [1, 1]} : vector<8x18xi32> to vector<8x1xi32>
    %20 = vector.broadcast %19 : vector<8x1xi32> to vector<8x512xi32>
    %21 = arith.cmpi eq, %20, %1 : vector<8x512xi32>
    %22 = arith.extui %21 : vector<8x512xi1> to vector<8x512xi32>
    %23 = arith.sitofp %22 : vector<8x512xi32> to vector<8x512xf32>
    %24 = arith.addf %18, %23 : vector<8x512xf32>
    %25 = vector.extract_strided_slice %0 {offsets = [0, 4], sizes = [8, 1], strides = [1, 1]} : vector<8x18xi32> to vector<8x1xi32>
    %26 = vector.broadcast %25 : vector<8x1xi32> to vector<8x512xi32>
    %27 = arith.cmpi eq, %26, %1 : vector<8x512xi32>
    %28 = arith.extui %27 : vector<8x512xi1> to vector<8x512xi32>
    %29 = arith.sitofp %28 : vector<8x512xi32> to vector<8x512xf32>
    %30 = arith.addf %24, %29 : vector<8x512xf32>
    %31 = vector.extract_strided_slice %0 {offsets = [0, 5], sizes = [8, 1], strides = [1, 1]} : vector<8x18xi32> to vector<8x1xi32>
    %32 = vector.broadcast %31 : vector<8x1xi32> to vector<8x512xi32>
    %33 = arith.cmpi eq, %32, %1 : vector<8x512xi32>
    %34 = arith.extui %33 : vector<8x512xi1> to vector<8x512xi32>
    %35 = arith.sitofp %34 : vector<8x512xi32> to vector<8x512xf32>
    %36 = arith.addf %30, %35 : vector<8x512xf32>
    %37 = vector.extract_strided_slice %0 {offsets = [0, 6], sizes = [8, 1], strides = [1, 1]} : vector<8x18xi32> to vector<8x1xi32>
    %38 = vector.broadcast %37 : vector<8x1xi32> to vector<8x512xi32>
    %39 = arith.cmpi eq, %38, %1 : vector<8x512xi32>
    %40 = arith.extui %39 : vector<8x512xi1> to vector<8x512xi32>
    %41 = arith.sitofp %40 : vector<8x512xi32> to vector<8x512xf32>
    %42 = arith.addf %36, %41 : vector<8x512xf32>
    %43 = vector.extract_strided_slice %0 {offsets = [0, 7], sizes = [8, 1], strides = [1, 1]} : vector<8x18xi32> to vector<8x1xi32>
    %44 = vector.broadcast %43 : vector<8x1xi32> to vector<8x512xi32>
    %45 = arith.cmpi eq, %44, %1 : vector<8x512xi32>
    %46 = arith.extui %45 : vector<8x512xi1> to vector<8x512xi32>
    %47 = arith.sitofp %46 : vector<8x512xi32> to vector<8x512xf32>
    %48 = arith.addf %42, %47 : vector<8x512xf32>
    %49 = vector.extract_strided_slice %0 {offsets = [0, 8], sizes = [8, 1], strides = [1, 1]} : vector<8x18xi32> to vector<8x1xi32>
    %50 = vector.broadcast %49 : vector<8x1xi32> to vector<8x512xi32>
    %51 = arith.cmpi eq, %50, %1 : vector<8x512xi32>
    %52 = arith.extui %51 : vector<8x512xi1> to vector<8x512xi32>
    %53 = arith.sitofp %52 : vector<8x512xi32> to vector<8x512xf32>
    %54 = arith.addf %48, %53 : vector<8x512xf32>
    %55 = vector.extract_strided_slice %0 {offsets = [0, 9], sizes = [8, 1], strides = [1, 1]} : vector<8x18xi32> to vector<8x1xi32>
    %56 = vector.broadcast %55 : vector<8x1xi32> to vector<8x512xi32>
    %57 = arith.cmpi eq, %56, %1 : vector<8x512xi32>
    %58 = arith.extui %57 : vector<8x512xi1> to vector<8x512xi32>
    %59 = arith.sitofp %58 : vector<8x512xi32> to vector<8x512xf32>
    %60 = arith.addf %54, %59 : vector<8x512xf32>
    %61 = vector.extract_strided_slice %0 {offsets = [0, 10], sizes = [8, 1], strides = [1, 1]} : vector<8x18xi32> to vector<8x1xi32>
    %62 = vector.broadcast %61 : vector<8x1xi32> to vector<8x512xi32>
    %63 = arith.cmpi eq, %62, %1 : vector<8x512xi32>
    %64 = arith.extui %63 : vector<8x512xi1> to vector<8x512xi32>
    %65 = arith.sitofp %64 : vector<8x512xi32> to vector<8x512xf32>
    %66 = arith.addf %60, %65 : vector<8x512xf32>
    %67 = vector.extract_strided_slice %0 {offsets = [0, 11], sizes = [8, 1], strides = [1, 1]} : vector<8x18xi32> to vector<8x1xi32>
    %68 = vector.broadcast %67 : vector<8x1xi32> to vector<8x512xi32>
    %69 = arith.cmpi eq, %68, %1 : vector<8x512xi32>
    %70 = arith.extui %69 : vector<8x512xi1> to vector<8x512xi32>
    %71 = arith.sitofp %70 : vector<8x512xi32> to vector<8x512xf32>
    %72 = arith.addf %66, %71 : vector<8x512xf32>
    %73 = vector.extract_strided_slice %0 {offsets = [0, 12], sizes = [8, 1], strides = [1, 1]} : vector<8x18xi32> to vector<8x1xi32>
    %74 = vector.broadcast %73 : vector<8x1xi32> to vector<8x512xi32>
    %75 = arith.cmpi eq, %74, %1 : vector<8x512xi32>
    %76 = arith.extui %75 : vector<8x512xi1> to vector<8x512xi32>
    %77 = arith.sitofp %76 : vector<8x512xi32> to vector<8x512xf32>
    %78 = arith.addf %72, %77 : vector<8x512xf32>
    %79 = vector.extract_strided_slice %0 {offsets = [0, 13], sizes = [8, 1], strides = [1, 1]} : vector<8x18xi32> to vector<8x1xi32>
    %80 = vector.broadcast %79 : vector<8x1xi32> to vector<8x512xi32>
    %81 = arith.cmpi eq, %80, %1 : vector<8x512xi32>
    %82 = arith.extui %81 : vector<8x512xi1> to vector<8x512xi32>
    %83 = arith.sitofp %82 : vector<8x512xi32> to vector<8x512xf32>
    %84 = arith.addf %78, %83 : vector<8x512xf32>
    %85 = vector.extract_strided_slice %0 {offsets = [0, 14], sizes = [8, 1], strides = [1, 1]} : vector<8x18xi32> to vector<8x1xi32>
    %86 = vector.broadcast %85 : vector<8x1xi32> to vector<8x512xi32>
    %87 = arith.cmpi eq, %86, %1 : vector<8x512xi32>
    %88 = arith.extui %87 : vector<8x512xi1> to vector<8x512xi32>
    %89 = arith.sitofp %88 : vector<8x512xi32> to vector<8x512xf32>
    %90 = arith.addf %84, %89 : vector<8x512xf32>
    %91 = vector.extract_strided_slice %0 {offsets = [0, 15], sizes = [8, 1], strides = [1, 1]} : vector<8x18xi32> to vector<8x1xi32>
    %92 = vector.broadcast %91 : vector<8x1xi32> to vector<8x512xi32>
    %93 = arith.cmpi eq, %92, %1 : vector<8x512xi32>
    %94 = arith.extui %93 : vector<8x512xi1> to vector<8x512xi32>
    %95 = arith.sitofp %94 : vector<8x512xi32> to vector<8x512xf32>
    %96 = arith.addf %90, %95 : vector<8x512xf32>
    %97 = vector.extract_strided_slice %0 {offsets = [0, 16], sizes = [8, 1], strides = [1, 1]} : vector<8x18xi32> to vector<8x1xi32>
    %98 = vector.broadcast %97 : vector<8x1xi32> to vector<8x512xi32>
    %99 = arith.cmpi eq, %98, %1 : vector<8x512xi32>
    %100 = arith.extui %99 : vector<8x512xi1> to vector<8x512xi32>
    %101 = arith.sitofp %100 : vector<8x512xi32> to vector<8x512xf32>
    %102 = arith.addf %96, %101 : vector<8x512xf32>
    %103 = vector.extract_strided_slice %0 {offsets = [0, 17], sizes = [8, 1], strides = [1, 1]} : vector<8x18xi32> to vector<8x1xi32>
    %104 = vector.broadcast %103 : vector<8x1xi32> to vector<8x512xi32>
    %105 = arith.cmpi eq, %104, %1 : vector<8x512xi32>
    %106 = arith.extui %105 : vector<8x512xi1> to vector<8x512xi32>
    %107 = arith.sitofp %106 : vector<8x512xi32> to vector<8x512xf32>
    %108 = arith.addf %102, %107 : vector<8x512xf32>
    %109 = arith.truncf %108 : vector<8x512xf32> to vector<8x512xbf16>
    %c0_1 = arith.constant 0 : index
    %c0_2 = arith.constant 0 : index
    %110 = vector.load %arg3[%c0_1, %c0_2] : memref<512x128xbf16, #tpu.memory_space<vmem>>, vector<512x128xbf16>
    %cst = arith.constant dense<0.000000e+00> : vector<8x128xf32>
    %111 = tpu.matmul %109, %110, %cst {dimension_numbers = #tpu.dot_dimension_numbers<[1], [0], [0], [1], [0, 0, 1, 1], [], []>} : vector<8x512xbf16>, vector<512x128xbf16>, vector<8x128xf32> -> vector<8x128xf32>
    %c0_3 = arith.constant 0 : index
    %c0_4 = arith.constant 0 : index
    %112 = vector.load %arg2[%c0_3, %c0_4] : memref<8x24xf32, #tpu.memory_space<vmem>>, vector<8x24xf32>
    %113 = arith.truncf %112 : vector<8x24xf32> to vector<8x24xbf16>
    %c0_5 = arith.constant 0 : index
    %c0_6 = arith.constant 0 : index
    %114 = vector.load %arg4[%c0_5, %c0_6] : memref<24x128xbf16, #tpu.memory_space<vmem>>, vector<24x128xbf16>
    %cst_7 = arith.constant dense<0.000000e+00> : vector<8x128xf32>
    %115 = tpu.matmul %113, %114, %cst_7 {dimension_numbers = #tpu.dot_dimension_numbers<[1], [0], [0], [1], [0, 0, 1, 1], [], []>} : vector<8x24xbf16>, vector<24x128xbf16>, vector<8x128xf32> -> vector<8x128xf32>
    %116 = arith.addf %111, %115 : vector<8x128xf32>
    %c0_8 = arith.constant 0 : index
    %c0_9 = arith.constant 0 : index
    %117 = vector.load %arg5[%c0_8, %c0_9] : memref<8x128xf32, #tpu.memory_space<vmem>>, vector<8x128xf32>
    tpu.vector_store %arg5[%c0_8, %c0_9], %116 {strides = array<i32>} : memref<8x128xf32, #tpu.memory_space<vmem>>, vector<8x128xf32>,
    return
  }
  func.func @transform_0(%arg0: i32) -> (i32, i32) {
    %c0_i32 = arith.constant 0 : i32
    %c0_i32_0 = arith.constant 0 : i32
    return %arg0, %c0_i32 : i32, i32
  }
  func.func @transform_1(%arg0: i32) -> (i32, i32) {
    %c0_i32 = arith.constant 0 : i32
    %c0_i32_0 = arith.constant 0 : i32
    return %arg0, %c0_i32 : i32, i32
  }
  func.func @transform_2(%arg0: i32) -> (i32, i32) {
    %c0_i32 = arith.constant 0 : i32
    %c0_i32_0 = arith.constant 0 : i32
    %c0_i32_1 = arith.constant 0 : i32
    return %c0_i32, %c0_i32_0 : i32, i32
  }
  func.func @transform_3(%arg0: i32) -> (i32, i32) {
    %c0_i32 = arith.constant 0 : i32
    %c0_i32_0 = arith.constant 0 : i32
    %c0_i32_1 = arith.constant 0 : i32
    return %c0_i32, %c0_i32_0 : i32, i32
  }
  func.func @transform_4(%arg0: i32) -> (i32, i32) {
    %c0_i32 = arith.constant 0 : i32
    %c0_i32_0 = arith.constant 0 : i32
    return %arg0, %c0_i32 : i32, i32
  }
}

</mosaic_0001>

<llo_original>
// kernel: tpu_custom_call.1
$region0: #{tpu_custom_call.1}
  #allocation0 [shape = 'u32[]', space=smem, size = 0x4, offset = 0x4, fixed_abs, tag = 'smem constant byte address 0x4 - core index']
  #allocation1 [shape = 'u32[144,128]{1,0:T(1,128)}', space=vmem, size = 0x12000, scoped, tag = 'internal scratch']
  %s0 = inlined_call_operand.hbm [shape: s32[16,18], index: 0, kind: input, shape index: {}]
  %s1 = inlined_call_operand.hbm [shape: f32[16,24], index: 1, kind: input, shape index: {}]
  %s2 = inlined_call_operand.hbm [shape: bf16[512,128], index: 2, kind: input, shape index: {}]
  %s3 = inlined_call_operand.hbm [shape: bf16[24,128], index: 3, kind: input, shape index: {}]
  %s4 = inlined_call_operand.hbm [shape: f32[16,128], index: 4, kind: output, shape index: {}]
  %s5 = sld [smem:[#allocation0]]
  $region65: #{tpu_custom_call.1} parent=0
    _
  %s7 = ssub.s32 1, %s5
  %s8 = scalar_select 0, %s7, %s5
  $region1: #{tpu_custom_call.1} parent=0
    #allocation2 [shape = 'u8[8192]{0}', space=vmem, size = 0x2000, scoped, tag = 'input window, operand 0']
    #allocation3 [shape = 's32[2]{0}', space=sflag, size = 0x8, scoped, tag = 'scoped memory for tpu_custom_call.1']
    #allocation4 [shape = 's32[2]{0}', space=sflag, size = 0x8, scoped, tag = 'scoped memory for tpu_custom_call.1']
    #allocation5 [shape = 'u8[8192]{0}', space=vmem, size = 0x2000, scoped, tag = 'input window, operand 1']
    #allocation6 [shape = 's32[2]{0}', space=sflag, size = 0x8, scoped, tag = 'scoped memory for tpu_custom_call.1']
    #allocation7 [shape = 'u8[131072]{0}', space=vmem, size = 0x20000, scoped, tag = 'input window, operand 2, single buffered']
    #allocation8 [shape = 'u8[6144]{0}', space=vmem, size = 0x1800, scoped, tag = 'input window, operand 3, single buffered']
    #allocation9 [shape = 's32[1]{0}', space=sflag, size = 0x4, scoped, tag = 'scoped memory for tpu_custom_call.1']
    #allocation10 [shape = 'u8[8192]{0}', space=vmem, size = 0x2000, scoped, tag = 'output window, operand 0']
    %9 = vsyncpa [#allocation3], 0
    %s10 = scalar_lea.sflag [#allocation3], 1
    %11 = vsyncpa %s10, 0
    %12 = vsyncpa [#allocation6], 0
    %s13 = scalar_lea.sflag [#allocation6], 1
    %14 = vsyncpa %s13, 0
    %15 = vsyncpa [#allocation9], 0
    %16 = vsyncpa [#allocation4], 0
    %s17 = scalar_lea.sflag [#allocation4], 1
    %18 = vsyncpa %s17, 0
    loop: start=0, step=1, limit=4
    $region2: #{tpu_custom_call.1} parent=1 // loop_pre_header
      _
    $region3: #{tpu_custom_call.1} parent=1 // loop_header
      %s20 = sphi 0, %s24
      %p21 = scmp.ge.s32.totalorder %s20, 4
      %s30 = sphi 0, %s32
      %s33 = sphi 0, %s30
      %s34 = sphi 0, %s33
      %s50 = sphi 0, %s34
      %s56 = sphi 0, %s58
      %s59 = sphi 0, %s56
      %s60 = sphi 0, %s59
      %s76 = sphi 0, %s60
      %s80 = sphi 0, %s80
      %s82 = sphi 0, %s80
      %s83 = sphi 0, %s82
      %s97 = sphi 0, %s83
      %s101 = sphi 0, %s101
      %s103 = sphi 0, %s101
      %s104 = sphi 0, %s103
      %s118 = sphi 0, %s104
      %s124 = sphi 0, %s126
      %s127 = sphi 0, %s124
      %s128 = sphi 0, %s127
      %s144 = sphi 0, %s128
    $region4: #{tpu_custom_call.1} parent=1 // loop_header_branch
      %23 = sbr.rel (%p21) target = $region8
    $region5: #{tpu_custom_call.1} parent=1 // loop_body
      %s25 = ssub.s32 %s20, 1
      %s26 = ssub.s32 %s20, 2
      %s27 = sadd.s32 %s20, 1
      %s28 = ssub.s32 %s20, %s27
      %p29 = scmp.eq.s32.totalorder %s28, 0
      %s31 = sadd.s32 %s30, 1
      %s32 = scalar_select %p29, %s30, %s31
      %p35 = pneg %p29
      %p36 = scmp.eq.s32.totalorder %s20, 1
      %p37 = por %p35, %p36
      %p38 = scmp.ne.s32.totalorder %s30, %s33
      %p39 = scmp.eq.s32.totalorder %s20, 0
      %p40 = por %p38, %p39
      %p41 = scmp.ne.s32.totalorder %s30, %s33
      %p42 = scmp.eq.s32.totalorder %s25, 1
      %p43 = por %p41, %p42
      %p44 = scmp.ne.s32.totalorder %s33, %s34
      %p45 = scmp.eq.s32.totalorder %s25, 0
      %p46 = por %p44, %p45
      %p47 = scmp.ne.s32.totalorder %s33, %s34
      %p48 = scmp.eq.s32.totalorder %s26, 1
      %p49 = por %p47, %p48
      %p51 = scmp.ne.s32.totalorder %s34, %s50
      %p52 = scmp.eq.s32.totalorder %s26, 0
      %p53 = por %p51, %p52
      %s54 = ssub.s32 %s20, %s27
      %p55 = scmp.eq.s32.totalorder %s54, 0
      %s57 = sadd.s32 %s56, 1
      %s58 = scalar_select %p55, %s56, %s57
      %p61 = pneg %p55
      %p62 = scmp.eq.s32.totalorder %s20, 1
      %p63 = por %p61, %p62
      %p64 = scmp.ne.s32.totalorder %s56, %s59
      %p65 = scmp.eq.s32.totalorder %s20, 0
      %p66 = por %p64, %p65
      %p67 = scmp.ne.s32.totalorder %s56, %s59
      %p68 = scmp.eq.s32.totalorder %s25, 1
      %p69 = por %p67, %p68
      %p70 = scmp.ne.s32.totalorder %s59, %s60
      %p71 = scmp.eq.s32.totalorder %s25, 0
      %p72 = por %p70, %p71
      %p73 = scmp.ne.s32.totalorder %s59, %s60
      %p74 = scmp.eq.s32.totalorder %s26, 1
      %p75 = por %p73, %p74
      %p77 = scmp.ne.s32.totalorder %s60, %s76
      %p78 = scmp.eq.s32.totalorder %s26, 0
      %p79 = por %p77, %p78
      %s81 = sadd.s32 %s80, 1
      %p84 = scmp.eq.s32.totalorder %s20, 1
      %p85 = scmp.ne.s32.totalorder %s80, %s82
      %p86 = scmp.eq.s32.totalorder %s20, 0
      %p87 = por %p85, %p86
      %p88 = scmp.ne.s32.totalorder %s80, %s82
      %p89 = scmp.eq.s32.totalorder %s25, 1
      %p90 = por %p88, %p89
      %p91 = scmp.ne.s32.totalorder %s82, %s83
      %p92 = scmp.eq.s32.totalorder %s25, 0
      %p93 = por %p91, %p92
      %p94 = scmp.ne.s32.totalorder %s82, %s83
      %p95 = scmp.eq.s32.totalorder %s26, 1
      %p96 = por %p94, %p95
      %p98 = scmp.ne.s32.totalorder %s83, %s97
      %p99 = scmp.eq.s32.totalorder %s26, 0
      %p100 = por %p98, %p99
      %s102 = sadd.s32 %s101, 1
      %p105 = scmp.eq.s32.totalorder %s20, 1
      %p106 = scmp.ne.s32.totalorder %s101, %s103
      %p107 = scmp.eq.s32.totalorder %s20, 0
      %p108 = por %p106, %p107
      %p109 = scmp.ne.s32.totalorder %s101, %s103
      %p110 = scmp.eq.s32.totalorder %s25, 1
      %p111 = por %p109, %p110
      %p112 = scmp.ne.s32.totalorder %s103, %s104
      %p113 = scmp.eq.s32.totalorder %s25, 0
      %p114 = por %p112, %p113
      %p115 = scmp.ne.s32.totalorder %s103, %s104
      %p116 = scmp.eq.s32.totalorder %s26, 1
      %p117 = por %p115, %p116
      %p119 = scmp.ne.s32.totalorder %s104, %s118
      %p120 = scmp.eq.s32.totalorder %s26, 0
      %p121 = por %p119, %p120
      %s122 = ssub.s32 %s20, %s27
      %p123 = scmp.eq.s32.totalorder %s122, 0
      %s125 = sadd.s32 %s124, 1
      %s126 = scalar_select %p123, %s124, %s125
      %p129 = pneg %p123
      %p130 = scmp.eq.s32.totalorder %s20, 1
      %p131 = por %p129, %p130
      %p132 = scmp.ne.s32.totalorder %s124, %s127
      %p133 = scmp.eq.s32.totalorder %s20, 0
      %p134 = por %p132, %p133
      %p135 = scmp.ne.s32.totalorder %s124, %s127
      %p136 = scmp.eq.s32.totalorder %s25, 1
      %p137 = por %p135, %p136
      %p138 = scmp.ne.s32.totalorder %s127, %s128
      %p139 = scmp.eq.s32.totalorder %s25, 0
      %p140 = por %p138, %p139
      %p141 = scmp.ne.s32.totalorder %s127, %s128
      %p142 = scmp.eq.s32.totalorder %s26, 1
      %p143 = por %p141, %p142
      %p145 = scmp.ne.s32.totalorder %s128, %s144
      %p146 = scmp.eq.s32.totalorder %s26, 0
      %p147 = por %p145, %p146
      %p148 = scmp.le.s32.totalorder 1, %s20
      %p149 = scmp.lt.s32.totalorder %s20, 3
      %p150 = pnand %p148, %p149
      %p151 = pneg %p150
      // Predicated region
      $region9: #{tpu_custom_call.1} parent=5 // pred_check
        _
      $region10: #{tpu_custom_call.1} parent=5 // pred_check_branch
        %153 = sbr.rel (%p150) target = $region12
      $region11: #{tpu_custom_call.1} parent=5 // pred_region
        %s154 = ssub.s32 %s20, 1
        // Predicated region
        $region13: #{tpu_custom_call.1} parent=11 // pred_check
          %p155 = pneg %p93
        $region14: #{tpu_custom_call.1} parent=11 // pred_check_branch
          %157 = sbr.rel (%p155) target = $region16
        $region15: #{tpu_custom_call.1} parent=11 // pred_region
          %s159 = ssub.s32 4096, 4096
          %160 = vsyncadd [#allocation6], %s159
          %s161 = sshll.u32 [#allocation7], 4
          %s162 = int_to_ptr.vmem [resolvable:$true] %s161
          %167 = dma.hbm_to_vmem [thread:$0]  %s2, 4096, %s162, [#allocation6], 64, 64, 4
        $region16: #{tpu_custom_call.1} parent=11 // pred_fallthru
          _
        // Predicated region
        $region17: #{tpu_custom_call.1} parent=11 // pred_check
          %p168 = pneg %p114
        $region18: #{tpu_custom_call.1} parent=11 // pred_check_branch
          %170 = sbr.rel (%p168) target = $region20
        $region19: #{tpu_custom_call.1} parent=11 // pred_region
          %s172 = ssub.s32 192, 192
          %173 = vsyncadd [#allocation9], %s172
          %s174 = sshll.u32 [#allocation8], 4
          %s175 = int_to_ptr.vmem [resolvable:$true] %s174
          %180 = dma.hbm_to_vmem [thread:$0]  %s3, 192, %s175, [#allocation9], 64, 64, 4
        $region20: #{tpu_custom_call.1} parent=11 // pred_fallthru
          _
      $region12: #{tpu_custom_call.1} parent=5 // pred_fallthru
        _
      %p181 = scmp.lt.s32.totalorder %s20, 2
      // Predicated region
      $region21: #{tpu_custom_call.1} parent=5 // pred_check
        %p182 = pneg %p181
      $region22: #{tpu_custom_call.1} parent=5 // pred_check_branch
        %184 = sbr.rel (%p182) target = $region24
      $region23: #{tpu_custom_call.1} parent=5 // pred_region
        // Predicated region
        $region25: #{tpu_custom_call.1} parent=23 // pred_check
          %p185 = pneg %p40
        $region26: #{tpu_custom_call.1} parent=23 // pred_check_branch
          %187 = sbr.rel (%p185) target = $region28
        $region27: #{tpu_custom_call.1} parent=23 // pred_region
          %s188 = sand.u32 %s30, 1
          %s189 = scalar_lea.sflag [#allocation3], %s188
          %s190 = sand.u32 %s30, 1
          %s191 = smul.addr %s190, 8
          %s192 = scalar_lea.vmem [#allocation2], %s191
          %s194 = ssub.s32 128, 128
          %195 = vsyncadd %s189, %s194
          %s196 = smul.addr %s20, 128
          %s197 = scalar_lea.hbm %s0, %s196
          %s199 = sshll.u32 %s192, 4
          %s200 = int_to_ptr.vmem [resolvable:$true] %s199
          %202 = dma.hbm_to_vmem [thread:$0]  %s197, 128, %s200, %s189
        $region28: #{tpu_custom_call.1} parent=23 // pred_fallthru
          _
        // Predicated region
        $region29: #{tpu_custom_call.1} parent=23 // pred_check
          %p203 = pneg %p66
        $region30: #{tpu_custom_call.1} parent=23 // pred_check_branch
          %205 = sbr.rel (%p203) target = $region32
        $region31: #{tpu_custom_call.1} parent=23 // pred_region
          %s206 = sand.u32 %s20, 1
          %s207 = scalar_lea.sflag [#allocation6], %s206
          %s208 = sand.u32 %s56, 1
          %s209 = smul.addr %s208, 8
          %s210 = scalar_lea.vmem [#allocation5], %s209
          %s212 = ssub.s32 128, 128
          %213 = vsyncadd %s207, %s212
          %s214 = smul.addr %s20, 128
          %s215 = scalar_lea.hbm %s1, %s214
          %s217 = sshll.u32 %s210, 4
          %s218 = int_to_ptr.vmem [resolvable:$true] %s217
          %220 = dma.hbm_to_vmem [thread:$0]  %s215, 128, %s218, %s207
        $region32: #{tpu_custom_call.1} parent=23 // pred_fallthru
          _
      $region24: #{tpu_custom_call.1} parent=5 // pred_fallthru
        _
      %p221 = scmp.le.s32.totalorder 1, %s20
      %p222 = scmp.lt.s32.totalorder %s20, 3
      %p223 = pnand %p221, %p222
      %p224 = pneg %p223
      // Predicated region
      $region33: #{tpu_custom_call.1} parent=5 // pred_check
        _
      $region34: #{tpu_custom_call.1} parent=5 // pred_check_branch
        %226 = sbr.rel (%p223) target = $region36
      $region35: #{tpu_custom_call.1} parent=5 // pred_region
        %s227 = ssub.s32 %s20, 1
        %s228 = sand.u32 %s33, 1
        %s229 = scalar_lea.sflag [#allocation3], %s228
        %s230 = sand.u32 %s33, 1
        %s231 = smul.addr %s230, 8
        %s232 = scalar_lea.vmem [#allocation2], %s231
        // Predicated region
        $region37: #{tpu_custom_call.1} parent=35 // pred_check
          %p233 = pneg %p46
        $region38: #{tpu_custom_call.1} parent=35 // pred_check_branch
          %235 = sbr.rel (%p233) target = $region40
        $region39: #{tpu_custom_call.1} parent=35 // pred_region
          %236 = dma.done %s229, 128
        $region40: #{tpu_custom_call.1} parent=35 // pred_fallthru
          _
        %s237 = sand.u32 %s25, 1
        %s238 = scalar_lea.sflag [#allocation6], %s237
        %s239 = sand.u32 %s59, 1
        %s240 = smul.addr %s239, 8
        %s241 = scalar_lea.vmem [#allocation5], %s240
        // Predicated region
        $region41: #{tpu_custom_call.1} parent=35 // pred_check
          %p242 = pneg %p72
        $region42: #{tpu_custom_call.1} parent=35 // pred_check_branch
          %244 = sbr.rel (%p242) target = $region44
        $region43: #{tpu_custom_call.1} parent=35 // pred_region
          %245 = dma.done %s238, 128
        $region44: #{tpu_custom_call.1} parent=35 // pred_fallthru
          _
        // Predicated region
        $region45: #{tpu_custom_call.1} parent=35 // pred_check
          %p246 = pneg %p93
        $region46: #{tpu_custom_call.1} parent=35 // pred_check_branch
          %248 = sbr.rel (%p246) target = $region48
        $region47: #{tpu_custom_call.1} parent=35 // pred_region
          %249 = dma.done [#allocation6], 4096
        $region48: #{tpu_custom_call.1} parent=35 // pred_fallthru
          _
        // Predicated region
        $region49: #{tpu_custom_call.1} parent=35 // pred_check
          %p250 = pneg %p114
        $region50: #{tpu_custom_call.1} parent=35 // pred_check_branch
          %252 = sbr.rel (%p250) target = $region52
        $region51: #{tpu_custom_call.1} parent=35 // pred_region
          %253 = dma.done [#allocation9], 192
        $region52: #{tpu_custom_call.1} parent=35 // pred_fallthru
          _
        %s254 = sand.u32 %s33, 1
        %s255 = scalar_lea.sflag [#allocation3], %s254
        %s256 = sand.u32 %s33, 1
        %s257 = smul.addr %s256, 8
        %s258 = scalar_lea.vmem [#allocation2], %s257
        %p259 = pneg %p46
        %p260 = pneg %p43
        %s261 = sand.u32 %s25, 1
        %s262 = scalar_lea.sflag [#allocation6], %s261
        %s263 = sand.u32 %s59, 1
        %s264 = smul.addr %s263, 8
        %s265 = scalar_lea.vmem [#allocation5], %s264
        %p266 = pneg %p72
        %p267 = pneg %p69
        %p268 = pneg %p93
        %p269 = pneg %p90
        %p270 = pneg %p114
        %p271 = pneg %p111
        %p272 = pneg %p140
        %p273 = pneg %p137
        %s274 = sand.u32 %s127, 1
        %s275 = scalar_lea.sflag [#allocation4], %s274
        %s276 = sand.u32 %s127, 1
        %s277 = smul.addr %s276, 8
        %s278 = scalar_lea.vmem [#allocation10], %s277
        %v280 = vld [vmem:[%s232] sm:$0xff]
        %v281 = vlaneseq
        %v282 = vand.u32 %v281, 127
        %v283 = vadd.s32 %v282, 128
        %v284 = vadd.s32 %v282, 256
        %v285 = vadd.s32 %v282, 384
        %286 = vset.pattern.permute.xlu0 0
        %287 = vperm.xlu0 %286, %v280
        %v288 = vpop.permute.xlu0 %287
        %vm289 = vcmp.eq.s32.totalorder %v288, %v282
        %vm290 = vcmp.eq.s32.totalorder %v288, %v283
        %vm291 = vcmp.eq.s32.totalorder %v288, %v284
        %vm292 = vcmp.eq.s32.totalorder %v288, %v285
        %v293 = vsel %vm289, 1, 0
        %v294 = vsel %vm290, 1, 0
        %v295 = vsel %vm291, 1, 0
        %v296 = vsel %vm292, 1, 0
        %v297 = vcvt.s32.f32 %v293
        %v298 = vcvt.s32.f32 %v294
        %v299 = vcvt.s32.f32 %v295
        %v300 = vcvt.s32.f32 %v296
        %301 = vset.pattern.permute.xlu0 1
        %302 = vperm.xlu0 %301, %v280
        %v303 = vpop.permute.xlu0 %302
        %vm304 = vcmp.eq.s32.totalorder %v303, %v282
        %vm305 = vcmp.eq.s32.totalorder %v303, %v283
        %vm306 = vcmp.eq.s32.totalorder %v303, %v284
        %vm307 = vcmp.eq.s32.totalorder %v303, %v285
        %v308 = vsel %vm304, 1, 0
        %v309 = vsel %vm305, 1, 0
        %v310 = vsel %vm306, 1, 0
        %v311 = vsel %vm307, 1, 0
        %v312 = vcvt.s32.f32 %v308
        %v313 = vcvt.s32.f32 %v309
        %v314 = vcvt.s32.f32 %v310
        %v315 = vcvt.s32.f32 %v311
        %v316 = vadd.f32 %v297, %v312
        %v317 = vadd.f32 %v298, %v313
        %v318 = vadd.f32 %v299, %v314
        %v319 = vadd.f32 %v300, %v315
        %320 = vset.pattern.permute.xlu0 2
        %321 = vperm.xlu0 %320, %v280
        %v322 = vpop.permute.xlu0 %321
        %vm323 = vcmp.eq.s32.totalorder %v322, %v282
        %vm324 = vcmp.eq.s32.totalorder %v322, %v283
        %vm325 = vcmp.eq.s32.totalorder %v322, %v284
        %vm326 = vcmp.eq.s32.totalorder %v322, %v285
        %v327 = vsel %vm323, 1, 0
        %v328 = vsel %vm324, 1, 0
        %v329 = vsel %vm325, 1, 0
        %v330 = vsel %vm326, 1, 0
        %v331 = vcvt.s32.f32 %v327
        %v332 = vcvt.s32.f32 %v328
        %v333 = vcvt.s32.f32 %v329
        %v334 = vcvt.s32.f32 %v330
        %v335 = vadd.f32 %v316, %v331
        %v336 = vadd.f32 %v317, %v332
        %v337 = vadd.f32 %v318, %v333
        %v338 = vadd.f32 %v319, %v334
        %339 = vset.pattern.permute.xlu0 3
        %340 = vperm.xlu0 %339, %v280
        %v341 = vpop.permute.xlu0 %340
        %vm342 = vcmp.eq.s32.totalorder %v341, %v282
        %vm343 = vcmp.eq.s32.totalorder %v341, %v283
        %vm344 = vcmp.eq.s32.totalorder %v341, %v284
        %vm345 = vcmp.eq.s32.totalorder %v341, %v285
        %v346 = vsel %vm342, 1, 0
        %v347 = vsel %vm343, 1, 0
        %v348 = vsel %vm344, 1, 0
        %v349 = vsel %vm345, 1, 0
        %v350 = vcvt.s32.f32 %v346
        %v351 = vcvt.s32.f32 %v347
        %v352 = vcvt.s32.f32 %v348
        %v353 = vcvt.s32.f32 %v349
        %v354 = vadd.f32 %v335, %v350
        %v355 = vadd.f32 %v336, %v351
        %v356 = vadd.f32 %v337, %v352
        %v357 = vadd.f32 %v338, %v353
        %358 = vset.pattern.permute.xlu0 4
        %359 = vperm.xlu0 %358, %v280
        %v360 = vpop.permute.xlu0 %359
        %vm361 = vcmp.eq.s32.totalorder %v360, %v282
        %vm362 = vcmp.eq.s32.totalorder %v360, %v283
        %vm363 = vcmp.eq.s32.totalorder %v360, %v284
        %vm364 = vcmp.eq.s32.totalorder %v360, %v285
        %v365 = vsel %vm361, 1, 0
        %v366 = vsel %vm362, 1, 0
        %v367 = vsel %vm363, 1, 0
        %v368 = vsel %vm364, 1, 0
        %v369 = vcvt.s32.f32 %v365
        %v370 = vcvt.s32.f32 %v366
        %v371 = vcvt.s32.f32 %v367
        %v372 = vcvt.s32.f32 %v368
        %v373 = vadd.f32 %v354, %v369
        %v374 = vadd.f32 %v355, %v370
        %v375 = vadd.f32 %v356, %v371
        %v376 = vadd.f32 %v357, %v372
        %377 = vset.pattern.permute.xlu0 5
        %378 = vperm.xlu0 %377, %v280
        %v379 = vpop.permute.xlu0 %378
        %vm380 = vcmp.eq.s32.totalorder %v379, %v282
        %vm381 = vcmp.eq.s32.totalorder %v379, %v283
        %vm382 = vcmp.eq.s32.totalorder %v379, %v284
        %vm383 = vcmp.eq.s32.totalorder %v379, %v285
        %v384 = vsel %vm380, 1, 0
        %v385 = vsel %vm381, 1, 0
        %v386 = vsel %vm382, 1, 0
        %v387 = vsel %vm383, 1, 0
        %v388 = vcvt.s32.f32 %v384
        %v389 = vcvt.s32.f32 %v385
        %v390 = vcvt.s32.f32 %v386
        %v391 = vcvt.s32.f32 %v387
        %v392 = vadd.f32 %v373, %v388
        %v393 = vadd.f32 %v374, %v389
        %v394 = vadd.f32 %v375, %v390
        %v395 = vadd.f32 %v376, %v391
        %396 = vset.pattern.permute.xlu0 6
        %397 = vperm.xlu0 %396, %v280
        %v398 = vpop.permute.xlu0 %397
        %vm399 = vcmp.eq.s32.totalorder %v398, %v282
        %vm400 = vcmp.eq.s32.totalorder %v398, %v283
        %vm401 = vcmp.eq.s32.totalorder %v398, %v284
        %vm402 = vcmp.eq.s32.totalorder %v398, %v285
        %v403 = vsel %vm399, 1, 0
        %v404 = vsel %vm400, 1, 0
        %v405 = vsel %vm401, 1, 0
        %v406 = vsel %vm402, 1, 0
        %v407 = vcvt.s32.f32 %v403
        %v408 = vcvt.s32.f32 %v404
        %v409 = vcvt.s32.f32 %v405
        %v410 = vcvt.s32.f32 %v406
        %v411 = vadd.f32 %v392, %v407
        %v412 = vadd.f32 %v393, %v408
        %v413 = vadd.f32 %v394, %v409
        %v414 = vadd.f32 %v395, %v410
        %415 = vset.pattern.permute.xlu0 7
        %416 = vperm.xlu0 %415, %v280
        %v417 = vpop.permute.xlu0 %416
        %vm418 = vcmp.eq.s32.totalorder %v417, %v282
        %vm419 = vcmp.eq.s32.totalorder %v417, %v283
        %vm420 = vcmp.eq.s32.totalorder %v417, %v284
        %vm421 = vcmp.eq.s32.totalorder %v417, %v285
        %v422 = vsel %vm418, 1, 0
        %v423 = vsel %vm419, 1, 0
        %v424 = vsel %vm420, 1, 0
        %v425 = vsel %vm421, 1, 0
        %v426 = vcvt.s32.f32 %v422
        %v427 = vcvt.s32.f32 %v423
        %v428 = vcvt.s32.f32 %v424
        %v429 = vcvt.s32.f32 %v425
        %v430 = vadd.f32 %v411, %v426
        %v431 = vadd.f32 %v412, %v427
        %v432 = vadd.f32 %v413, %v428
        %v433 = vadd.f32 %v414, %v429
        %434 = vset.pattern.permute.xlu0 8
        %435 = vperm.xlu0 %434, %v280
        %v436 = vpop.permute.xlu0 %435
        %vm437 = vcmp.eq.s32.totalorder %v436, %v282
        %vm438 = vcmp.eq.s32.totalorder %v436, %v283
        %vm439 = vcmp.eq.s32.totalorder %v436, %v284
        %vm440 = vcmp.eq.s32.totalorder %v436, %v285
        %v441 = vsel %vm437, 1, 0
        %v442 = vsel %vm438, 1, 0
        %v443 = vsel %vm439, 1, 0
        %v444 = vsel %vm440, 1, 0
        %v445 = vcvt.s32.f32 %v441
        %v446 = vcvt.s32.f32 %v442
        %v447 = vcvt.s32.f32 %v443
        %v448 = vcvt.s32.f32 %v444
        %v449 = vadd.f32 %v430, %v445
        %v450 = vadd.f32 %v431, %v446
        %v451 = vadd.f32 %v432, %v447
        %v452 = vadd.f32 %v433, %v448
        %453 = vset.pattern.permute.xlu0 9
        %454 = vperm.xlu0 %453, %v280
        %v455 = vpop.permute.xlu0 %454
        %vm456 = vcmp.eq.s32.totalorder %v455, %v282
        %vm457 = vcmp.eq.s32.totalorder %v455, %v283
        %vm458 = vcmp.eq.s32.totalorder %v455, %v284
        %vm459 = vcmp.eq.s32.totalorder %v455, %v285
        %v460 = vsel %vm456, 1, 0
        %v461 = vsel %vm457, 1, 0
        %v462 = vsel %vm458, 1, 0
        %v463 = vsel %vm459, 1, 0
        %v464 = vcvt.s32.f32 %v460
        %v465 = vcvt.s32.f32 %v461
        %v466 = vcvt.s32.f32 %v462
        %v467 = vcvt.s32.f32 %v463
        %v468 = vadd.f32 %v449, %v464
        %v469 = vadd.f32 %v450, %v465
        %v470 = vadd.f32 %v451, %v466
        %v471 = vadd.f32 %v452, %v467
        %472 = vset.pattern.permute.xlu0 10
        %473 = vperm.xlu0 %472, %v280
        %v474 = vpop.permute.xlu0 %473
        %vm475 = vcmp.eq.s32.totalorder %v474, %v282
        %vm476 = vcmp.eq.s32.totalorder %v474, %v283
        %vm477 = vcmp.eq.s32.totalorder %v474, %v284
        %vm478 = vcmp.eq.s32.totalorder %v474, %v285
        %v479 = vsel %vm475, 1, 0
        %v480 = vsel %vm476, 1, 0
        %v481 = vsel %vm477, 1, 0
        %v482 = vsel %vm478, 1, 0
        %v483 = vcvt.s32.f32 %v479
        %v484 = vcvt.s32.f32 %v480
        %v485 = vcvt.s32.f32 %v481
        %v486 = vcvt.s32.f32 %v482
        %v487 = vadd.f32 %v468, %v483
        %v488 = vadd.f32 %v469, %v484
        %v489 = vadd.f32 %v470, %v485
        %v490 = vadd.f32 %v471, %v486
        %491 = vset.pattern.permute.xlu0 11
        %492 = vperm.xlu0 %491, %v280
        %v493 = vpop.permute.xlu0 %492
        %vm494 = vcmp.eq.s32.totalorder %v493, %v282
        %vm495 = vcmp.eq.s32.totalorder %v493, %v283
        %vm496 = vcmp.eq.s32.totalorder %v493, %v284
        %vm497 = vcmp.eq.s32.totalorder %v493, %v285
        %v498 = vsel %vm494, 1, 0
        %v499 = vsel %vm495, 1, 0
        %v500 = vsel %vm496, 1, 0
        %v501 = vsel %vm497, 1, 0
        %v502 = vcvt.s32.f32 %v498
        %v503 = vcvt.s32.f32 %v499
        %v504 = vcvt.s32.f32 %v500
        %v505 = vcvt.s32.f32 %v501
        %v506 = vadd.f32 %v487, %v502
        %v507 = vadd.f32 %v488, %v503
        %v508 = vadd.f32 %v489, %v504
        %v509 = vadd.f32 %v490, %v505
        %510 = vset.pattern.permute.xlu0 12
        %511 = vperm.xlu0 %510, %v280
        %v512 = vpop.permute.xlu0 %511
        %vm513 = vcmp.eq.s32.totalorder %v512, %v282
        %vm514 = vcmp.eq.s32.totalorder %v512, %v283
        %vm515 = vcmp.eq.s32.totalorder %v512, %v284
        %vm516 = vcmp.eq.s32.totalorder %v512, %v285
        %v517 = vsel %vm513, 1, 0
        %v518 = vsel %vm514, 1, 0
        %v519 = vsel %vm515, 1, 0
        %v520 = vsel %vm516, 1, 0
        %v521 = vcvt.s32.f32 %v517
        %v522 = vcvt.s32.f32 %v518
        %v523 = vcvt.s32.f32 %v519
        %v524 = vcvt.s32.f32 %v520
        %v525 = vadd.f32 %v506, %v521
        %v526 = vadd.f32 %v507, %v522
        %v527 = vadd.f32 %v508, %v523
        %v528 = vadd.f32 %v509, %v524
        %529 = vset.pattern.permute.xlu0 13
        %530 = vperm.xlu0 %529, %v280
        %v531 = vpop.permute.xlu0 %530
        %vm532 = vcmp.eq.s32.totalorder %v531, %v282
        %vm533 = vcmp.eq.s32.totalorder %v531, %v283
        %vm534 = vcmp.eq.s32.totalorder %v531, %v284
        %vm535 = vcmp.eq.s32.totalorder %v531, %v285
        %v536 = vsel %vm532, 1, 0
        %v537 = vsel %vm533, 1, 0
        %v538 = vsel %vm534, 1, 0
        %v539 = vsel %vm535, 1, 0
        %v540 = vcvt.s32.f32 %v536
        %v541 = vcvt.s32.f32 %v537
        %v542 = vcvt.s32.f32 %v538
        %v543 = vcvt.s32.f32 %v539
        %v544 = vadd.f32 %v525, %v540
        %v545 = vadd.f32 %v526, %v541
        %v546 = vadd.f32 %v527, %v542
        %v547 = vadd.f32 %v528, %v543
        %548 = vset.pattern.permute.xlu0 14
        %549 = vperm.xlu0 %548, %v280
        %v550 = vpop.permute.xlu0 %549
        %vm551 = vcmp.eq.s32.totalorder %v550, %v282
        %vm552 = vcmp.eq.s32.totalorder %v550, %v283
        %vm553 = vcmp.eq.s32.totalorder %v550, %v284
        %vm554 = vcmp.eq.s32.totalorder %v550, %v285
        %v555 = vsel %vm551, 1, 0
        %v556 = vsel %vm552, 1, 0
        %v557 = vsel %vm553, 1, 0
        %v558 = vsel %vm554, 1, 0
        %v559 = vcvt.s32.f32 %v555
        %v560 = vcvt.s32.f32 %v556
        %v561 = vcvt.s32.f32 %v557
        %v562 = vcvt.s32.f32 %v558
        %v563 = vadd.f32 %v544, %v559
        %v564 = vadd.f32 %v545, %v560
        %v565 = vadd.f32 %v546, %v561
        %v566 = vadd.f32 %v547, %v562
        %567 = vset.pattern.permute.xlu0 15
        %568 = vperm.xlu0 %567, %v280
        %v569 = vpop.permute.xlu0 %568
        %vm570 = vcmp.eq.s32.totalorder %v569, %v282
        %vm571 = vcmp.eq.s32.totalorder %v569, %v283
        %vm572 = vcmp.eq.s32.totalorder %v569, %v284
        %vm573 = vcmp.eq.s32.totalorder %v569, %v285
        %v574 = vsel %vm570, 1, 0
        %v575 = vsel %vm571, 1, 0
        %v576 = vsel %vm572, 1, 0
        %v577 = vsel %vm573, 1, 0
        %v578 = vcvt.s32.f32 %v574
        %v579 = vcvt.s32.f32 %v575
        %v580 = vcvt.s32.f32 %v576
        %v581 = vcvt.s32.f32 %v577
        %v582 = vadd.f32 %v563, %v578
        %v583 = vadd.f32 %v564, %v579
        %v584 = vadd.f32 %v565, %v580
        %v585 = vadd.f32 %v566, %v581
        %586 = vset.pattern.permute.xlu0 16
        %587 = vperm.xlu0 %586, %v280
        %v588 = vpop.permute.xlu0 %587
        %vm589 = vcmp.eq.s32.totalorder %v588, %v282
        %vm590 = vcmp.eq.s32.totalorder %v588, %v283
        %vm591 = vcmp.eq.s32.totalorder %v588, %v284
        %vm592 = vcmp.eq.s32.totalorder %v588, %v285
        %v593 = vsel %vm589, 1, 0
        %v594 = vsel %vm590, 1, 0
        %v595 = vsel %vm591, 1, 0
        %v596 = vsel %vm592, 1, 0
        %v597 = vcvt.s32.f32 %v593
        %v598 = vcvt.s32.f32 %v594
        %v599 = vcvt.s32.f32 %v595
        %v600 = vcvt.s32.f32 %v596
        %v601 = vadd.f32 %v582, %v597
        %v602 = vadd.f32 %v583, %v598
        %v603 = vadd.f32 %v584, %v599
        %v604 = vadd.f32 %v585, %v600
        %605 = vset.pattern.permute.xlu0 17
        %606 = vperm.xlu0 %605, %v280
        %v607 = vpop.permute.xlu0 %606
        %vm608 = vcmp.eq.s32.totalorder %v607, %v282
        %vm609 = vcmp.eq.s32.totalorder %v607, %v283
        %vm610 = vcmp.eq.s32.totalorder %v607, %v284
        %vm611 = vcmp.eq.s32.totalorder %v607, %v285
        %v612 = vsel %vm608, 1, 0
        %v613 = vsel %vm609, 1, 0
        %v614 = vsel %vm610, 1, 0
        %v615 = vsel %vm611, 1, 0
        %v616 = vcvt.s32.f32 %v612
        %v617 = vcvt.s32.f32 %v613
        %v618 = vcvt.s32.f32 %v614
        %v619 = vcvt.s32.f32 %v615
        %v620 = vadd.f32 %v601, %v616
        %v621 = vadd.f32 %v602, %v617
        %v622 = vadd.f32 %v603, %v618
        %v623 = vadd.f32 %v604, %v619
        %v624 = vpack.c.bf16 %v620, %v620
        %v625 = vpack.c.bf16 %v621, %v621
        %v626 = vpack.c.bf16 %v622, %v622
        %v627 = vpack.c.bf16 %v623, %v623
        %v628 = vld [vmem:[#allocation7] sm:$0xf]
        %v629 = vld [vmem:[#allocation7 + $0x4] sm:$0xf]
        %v630 = vld [vmem:[#allocation7 + $0x8] sm:$0xf]
        %v631 = vld [vmem:[#allocation7 + $0xc] sm:$0xf]
        %v632 = vld [vmem:[#allocation7 + $0x10] sm:$0xf]
        %v633 = vld [vmem:[#allocation7 + $0x14] sm:$0xf]
        %v634 = vld [vmem:[#allocation7 + $0x18] sm:$0xf]
        %v635 = vld [vmem:[#allocation7 + $0x1c] sm:$0xf]
        %v636 = vld [vmem:[#allocation7 + $0x20] sm:$0xf]
        %v637 = vld [vmem:[#allocation7 + $0x24] sm:$0xf]
        %v638 = vld [vmem:[#allocation7 + $0x28] sm:$0xf]
        %v639 = vld [vmem:[#allocation7 + $0x2c] sm:$0xf]
        %v640 = vld [vmem:[#allocation7 + $0x30] sm:$0xf]
        %v641 = vld [vmem:[#allocation7 + $0x34] sm:$0xf]
        %v642 = vld [vmem:[#allocation7 + $0x38] sm:$0xf]
        %v643 = vld [vmem:[#allocation7 + $0x3c] sm:$0xf]
        %v644 = vld [vmem:[#allocation7 + $0x40] sm:$0xf]
        %v645 = vld [vmem:[#allocation7 + $0x44] sm:$0xf]
        %v646 = vld [vmem:[#allocation7 + $0x48] sm:$0xf]
        %v647 = vld [vmem:[#allocation7 + $0x4c] sm:$0xf]
        %v648 = vld [vmem:[#allocation7 + $0x50] sm:$0xf]
        %v649 = vld [vmem:[#allocation7 + $0x54] sm:$0xf]
        %v650 = vld [vmem:[#allocation7 + $0x58] sm:$0xf]
        %v651 = vld [vmem:[#allocation7 + $0x5c] sm:$0xf]
        %v652 = vld [vmem:[#allocation7 + $0x60] sm:$0xf]
        %v653 = vld [vmem:[#allocation7 + $0x64] sm:$0xf]
        %v654 = vld [vmem:[#allocation7 + $0x68] sm:$0xf]
        %v655 = vld [vmem:[#allocation7 + $0x6c] sm:$0xf]
        %v656 = vld [vmem:[#allocation7 + $0x70] sm:$0xf]
        %v657 = vld [vmem:[#allocation7 + $0x74] sm:$0xf]
        %v658 = vld [vmem:[#allocation7 + $0x78] sm:$0xf]
        %v659 = vld [vmem:[#allocation7 + $0x7c] sm:$0xf]
        %v660 = vld [vmem:[#allocation7 + $0x80] sm:$0xf]
        %v661 = vld [vmem:[#allocation7 + $0x84] sm:$0xf]
        %v662 = vld [vmem:[#allocation7 + $0x88] sm:$0xf]
        %v663 = vld [vmem:[#allocation7 + $0x8c] sm:$0xf]
        %v664 = vld [vmem:[#allocation7 + $0x90] sm:$0xf]
        %v665 = vld [vmem:[#allocation7 + $0x94] sm:$0xf]
        %v666 = vld [vmem:[#allocation7 + $0x98] sm:$0xf]
        %v667 = vld [vmem:[#allocation7 + $0x9c] sm:$0xf]
        %v668 = vld [vmem:[#allocation7 + $0xa0] sm:$0xf]
        %v669 = vld [vmem:[#allocation7 + $0xa4] sm:$0xf]
        %v670 = vld [vmem:[#allocation7 + $0xa8] sm:$0xf]
        %v671 = vld [vmem:[#allocation7 + $0xac] sm:$0xf]
        %v672 = vld [vmem:[#allocation7 + $0xb0] sm:$0xf]
        %v673 = vld [vmem:[#allocation7 + $0xb4] sm:$0xf]
        %v674 = vld [vmem:[#allocation7 + $0xb8] sm:$0xf]
        %v675 = vld [vmem:[#allocation7 + $0xbc] sm:$0xf]
        %v676 = vld [vmem:[#allocation7 + $0xc0] sm:$0xf]
        %v677 = vld [vmem:[#allocation7 + $0xc4] sm:$0xf]
        %v678 = vld [vmem:[#allocation7 + $0xc8] sm:$0xf]
        %v679 = vld [vmem:[#allocation7 + $0xcc] sm:$0xf]
        %v680 = vld [vmem:[#allocation7 + $0xd0] sm:$0xf]
        %v681 = vld [vmem:[#allocation7 + $0xd4] sm:$0xf]
        %v682 = vld [vmem:[#allocation7 + $0xd8] sm:$0xf]
        %v683 = vld [vmem:[#allocation7 + $0xdc] sm:$0xf]
        %v684 = vld [vmem:[#allocation7 + $0xe0] sm:$0xf]
        %v685 = vld [vmem:[#allocation7 + $0xe4] sm:$0xf]
        %v686 = vld [vmem:[#allocation7 + $0xe8] sm:$0xf]
        %v687 = vld [vmem:[#allocation7 + $0xec] sm:$0xf]
        %v688 = vld [vmem:[#allocation7 + $0xf0] sm:$0xf]
        %v689 = vld [vmem:[#allocation7 + $0xf4] sm:$0xf]
        %v690 = vld [vmem:[#allocation7 + $0xf8] sm:$0xf]
        %v691 = vld [vmem:[#allocation7 + $0xfc] sm:$0xf]
        %v692 = vld [vmem:[%s241] sm:$0xff]
        %v693 = vpack.c.bf16 %v692, %v692
        %v694 = vld [vmem:[#allocation8] sm:$0xf]
        %v695 = vld [vmem:[#allocation8 + $0x4] sm:$0xf]
        %v696 = vld [vmem:[#allocation8 + $0x8] sm:$0xf]
        %v700 = vunpack.c.l.b16 %v694
        %v701 = vunpack.c.l.b16 %v695
        %v702 = vunpack.c.l.b16 %v696
        %v703 = vpack.c.b16 %v701, %v700
        %v704 = vpack.c.b16 %v702, %v702
        %vm706 = vcmask 195584
        %v708 = vsel %vm706, %v693, 0
        %vm710 = vcmask 1043456
        %v712 = vsel %vm710, %v704, 0
        %714 = vmatprep.subr.bf16.mxu0 0
        %715 = vmatpush1.bf16.msra.mxu0 %v703
        %716 = vmatprep.subr.bf16.mxu0 0
        %717 = vmatpush1.bf16.msra.mxu0 %v712
        %718 = vmatprep.subr.bf16.mxu0 0
        %719 = vmatpush1.bf16.msra.mxu0 0
        %720 = vmatprep.subr.bf16.mxu0 0
        %721 = vmatpush1.bf16.msra.mxu0 0
        %722 = vmatprep.subr.bf16.mxu0 0
        %723 = vmatpush1.bf16.msra.mxu0 0
        %724 = vmatprep.subr.bf16.mxu0 0
        %725 = vmatpush1.bf16.msra.mxu0 0
        %726 = vmatprep.subr.bf16.mxu0 0
        %727 = vmatpush1.bf16.msra.mxu0 0
        %728 = vmatprep.subr.bf16.mxu0 0
        %729 = vmatpush1.bf16.msra.mxu0 0
        %730 = vmatprep.subr.bf16.mxu0 0
        %731 = vmatpush1.bf16.msra.mxu0 0
        %732 = vmatprep.subr.bf16.mxu0 0
        %733 = vmatpush1.bf16.msra.mxu0 0
        %734 = vmatprep.subr.bf16.mxu0 0
        %735 = vmatpush1.bf16.msra.mxu0 0
        %736 = vmatprep.subr.bf16.mxu0 0
        %737 = vmatpush1.bf16.msra.mxu0 0
        %738 = vmatprep.subr.bf16.mxu0 0
        %739 = vmatpush1.bf16.msra.mxu0 0
        %740 = vmatprep.subr.bf16.mxu0 0
        %741 = vmatpush1.bf16.msra.mxu0 0
        %742 = vmatprep.subr.bf16.mxu0 0
        %743 = vmatpush1.bf16.msra.mxu0 0
        %744 = vmatprep.subr.bf16.mxu0 0
        %745 = vmatpush1.bf16.msra.mxu0 0
        %746 = vmatprep.mubr.bf16.mxu0 0
        %747 = vmatmul.mubr.bf16.gmra.mrb[0].mxu0 %v708
        %v748 = vpop.f32.mrb[0].mxu0
        %v749 = vadd.f32 0.0, %v748
        %v750 = vpop.f32.mrb[0].mxu0
        %v751 = vpop.f32.mrb[0].mxu0
        %v752 = vpop.f32.mrb[0].mxu0
        %753 = vdwg.mxu0
        %v818 = vunpack.c.l.b16 %v628
        %v819 = vunpack.c.l.b16 %v629
        %v820 = vunpack.c.l.b16 %v630
        %v821 = vunpack.c.l.b16 %v631
        %v822 = vunpack.c.l.b16 %v632
        %v823 = vunpack.c.l.b16 %v633
        %v824 = vunpack.c.l.b16 %v634
        %v825 = vunpack.c.l.b16 %v635
        %v826 = vunpack.c.l.b16 %v636
        %v827 = vunpack.c.l.b16 %v637
        %v828 = vunpack.c.l.b16 %v638
        %v829 = vunpack.c.l.b16 %v639
        %v830 = vunpack.c.l.b16 %v640
        %v831 = vunpack.c.l.b16 %v641
        %v832 = vunpack.c.l.b16 %v642
        %v833 = vunpack.c.l.b16 %v643
        %v834 = vunpack.c.l.b16 %v644
        %v835 = vunpack.c.l.b16 %v645
        %v836 = vunpack.c.l.b16 %v646
        %v837 = vunpack.c.l.b16 %v647
        %v838 = vunpack.c.l.b16 %v648
        %v839 = vunpack.c.l.b16 %v649
        %v840 = vunpack.c.l.b16 %v650
        %v841 = vunpack.c.l.b16 %v651
        %v842 = vunpack.c.l.b16 %v652
        %v843 = vunpack.c.l.b16 %v653
        %v844 = vunpack.c.l.b16 %v654
        %v845 = vunpack.c.l.b16 %v655
        %v846 = vunpack.c.l.b16 %v656
        %v847 = vunpack.c.l.b16 %v657
        %v848 = vunpack.c.l.b16 %v658
        %v849 = vunpack.c.l.b16 %v659
        %v850 = vunpack.c.l.b16 %v660
        %v851 = vunpack.c.l.b16 %v661
        %v852 = vunpack.c.l.b16 %v662
        %v853 = vunpack.c.l.b16 %v663
        %v854 = vunpack.c.l.b16 %v664
        %v855 = vunpack.c.l.b16 %v665
        %v856 = vunpack.c.l.b16 %v666
        %v857 = vunpack.c.l.b16 %v667
        %v858 = vunpack.c.l.b16 %v668
        %v859 = vunpack.c.l.b16 %v669
        %v860 = vunpack.c.l.b16 %v670
        %v861 = vunpack.c.l.b16 %v671
        %v862 = vunpack.c.l.b16 %v672
        %v863 = vunpack.c.l.b16 %v673
        %v864 = vunpack.c.l.b16 %v674
        %v865 = vunpack.c.l.b16 %v675
        %v866 = vunpack.c.l.b16 %v676
        %v867 = vunpack.c.l.b16 %v677
        %v868 = vunpack.c.l.b16 %v678
        %v869 = vunpack.c.l.b16 %v679
        %v870 = vunpack.c.l.b16 %v680
        %v871 = vunpack.c.l.b16 %v681
        %v872 = vunpack.c.l.b16 %v682
        %v873 = vunpack.c.l.b16 %v683
        %v874 = vunpack.c.l.b16 %v684
        %v875 = vunpack.c.l.b16 %v685
        %v876 = vunpack.c.l.b16 %v686
        %v877 = vunpack.c.l.b16 %v687
        %v878 = vunpack.c.l.b16 %v688
        %v879 = vunpack.c.l.b16 %v689
        %v880 = vunpack.c.l.b16 %v690
        %v881 = vunpack.c.l.b16 %v691
        %v882 = vpack.c.b16 %v819, %v818
        %v883 = vpack.c.b16 %v821, %v820
        %v884 = vpack.c.b16 %v823, %v822
        %v885 = vpack.c.b16 %v825, %v824
        %v886 = vpack.c.b16 %v827, %v826
        %v887 = vpack.c.b16 %v829, %v828
        %v888 = vpack.c.b16 %v831, %v830
        %v889 = vpack.c.b16 %v833, %v832
        %v890 = vpack.c.b16 %v835, %v834
        %v891 = vpack.c.b16 %v837, %v836
        %v892 = vpack.c.b16 %v839, %v838
        %v893 = vpack.c.b16 %v841, %v840
        %v894 = vpack.c.b16 %v843, %v842
        %v895 = vpack.c.b16 %v845, %v844
        %v896 = vpack.c.b16 %v847, %v846
        %v897 = vpack.c.b16 %v849, %v848
        %v898 = vpack.c.b16 %v851, %v850
        %v899 = vpack.c.b16 %v853, %v852
        %v900 = vpack.c.b16 %v855, %v854
        %v901 = vpack.c.b16 %v857, %v856
        %v902 = vpack.c.b16 %v859, %v858
        %v903 = vpack.c.b16 %v861, %v860
        %v904 = vpack.c.b16 %v863, %v862
        %v905 = vpack.c.b16 %v865, %v864
        %v906 = vpack.c.b16 %v867, %v866
        %v907 = vpack.c.b16 %v869, %v868
        %v908 = vpack.c.b16 %v871, %v870
        %v909 = vpack.c.b16 %v873, %v872
        %v910 = vpack.c.b16 %v875, %v874
        %v911 = vpack.c.b16 %v877, %v876
        %v912 = vpack.c.b16 %v879, %v878
        %v913 = vpack.c.b16 %v881, %v880
        %946 = vmatprep.subr.bf16.mxu0 0
        %947 = vmatpush1.bf16.msra.mxu0 %v882
        %948 = vmatprep.subr.bf16.mxu0 0
        %949 = vmatpush1.bf16.msra.mxu0 %v883
        %950 = vmatprep.subr.bf16.mxu0 0
        %951 = vmatpush1.bf16.msra.mxu0 %v884
        %952 = vmatprep.subr.bf16.mxu0 0
        %953 = vmatpush1.bf16.msra.mxu0 %v885
        %954 = vmatprep.subr.bf16.mxu0 0
        %955 = vmatpush1.bf16.msra.mxu0 %v886
        %956 = vmatprep.subr.bf16.mxu0 0
        %957 = vmatpush1.bf16.msra.mxu0 %v887
        %958 = vmatprep.subr.bf16.mxu0 0
        %959 = vmatpush1.bf16.msra.mxu0 %v888
        %960 = vmatprep.subr.bf16.mxu0 0
        %961 = vmatpush1.bf16.msra.mxu0 %v889
        %962 = vmatprep.subr.bf16.mxu0 0
        %963 = vmatpush1.bf16.msra.mxu0 %v890
        %964 = vmatprep.subr.bf16.mxu0 0
        %965 = vmatpush1.bf16.msra.mxu0 %v891
        %966 = vmatprep.subr.bf16.mxu0 0
        %967 = vmatpush1.bf16.msra.mxu0 %v892
        %968 = vmatprep.subr.bf16.mxu0 0
        %969 = vmatpush1.bf16.msra.mxu0 %v893
        %970 = vmatprep.subr.bf16.mxu0 0
        %971 = vmatpush1.bf16.msra.mxu0 %v894
        %972 = vmatprep.subr.bf16.mxu0 0
        %973 = vmatpush1.bf16.msra.mxu0 %v895
        %974 = vmatprep.subr.bf16.mxu0 0
        %975 = vmatpush1.bf16.msra.mxu0 %v896
        %976 = vmatprep.subr.bf16.mxu0 0
        %977 = vmatpush1.bf16.msra.mxu0 %v897
        %978 = vmatprep.mubr.bf16.mxu0 %v625
        %979 = vmatmul.mubr.bf16.gmra.mrb[0].mxu0 %v624
        %v980 = vpop.f32.mrb[0].mxu0
        %v981 = vadd.f32 %v749, %v980
        %v982 = vpop.f32.mrb[0].mxu0
        %v983 = vpop.f32.mrb[0].mxu0
        %v984 = vpop.f32.mrb[0].mxu0
        %985 = vdwg.mxu0
        %986 = vmatprep.subr.bf16.mxu0 0
        %987 = vmatpush1.bf16.msra.mxu0 %v898
        %988 = vmatprep.subr.bf16.mxu0 0
        %989 = vmatpush1.bf16.msra.mxu0 %v899
        %990 = vmatprep.subr.bf16.mxu0 0
        %991 = vmatpush1.bf16.msra.mxu0 %v900
        %992 = vmatprep.subr.bf16.mxu0 0
        %993 = vmatpush1.bf16.msra.mxu0 %v901
        %994 = vmatprep.subr.bf16.mxu0 0
        %995 = vmatpush1.bf16.msra.mxu0 %v902
        %996 = vmatprep.subr.bf16.mxu0 0
        %997 = vmatpush1.bf16.msra.mxu0 %v903
        %998 = vmatprep.subr.bf16.mxu0 0
        %999 = vmatpush1.bf16.msra.mxu0 %v904
        %1000 = vmatprep.subr.bf16.mxu0 0
        %1001 = vmatpush1.bf16.msra.mxu0 %v905
        %1002 = vmatprep.subr.bf16.mxu0 0
        %1003 = vmatpush1.bf16.msra.mxu0 %v906
        %1004 = vmatprep.subr.bf16.mxu0 0
        %1005 = vmatpush1.bf16.msra.mxu0 %v907
        %1006 = vmatprep.subr.bf16.mxu0 0
        %1007 = vmatpush1.bf16.msra.mxu0 %v908
        %1008 = vmatprep.subr.bf16.mxu0 0
        %1009 = vmatpush1.bf16.msra.mxu0 %v909
        %1010 = vmatprep.subr.bf16.mxu0 0
        %1011 = vmatpush1.bf16.msra.mxu0 %v910
        %1012 = vmatprep.subr.bf16.mxu0 0
        %1013 = vmatpush1.bf16.msra.mxu0 %v911
        %1014 = vmatprep.subr.bf16.mxu0 0
        %1015 = vmatpush1.bf16.msra.mxu0 %v912
        %1016 = vmatprep.subr.bf16.mxu0 0
        %1017 = vmatpush1.bf16.msra.mxu0 %v913
        %1018 = vmatprep.mubr.bf16.mxu0 %v627
        %1019 = vmatmul.mubr.bf16.gmra.mrb[0].mxu0 %v626
        %v1020 = vpop.f32.mrb[0].mxu0
        %v1021 = vadd.f32 %v981, %v1020
        %v1022 = vpop.f32.mrb[0].mxu0
        %v1023 = vpop.f32.mrb[0].mxu0
        %v1024 = vpop.f32.mrb[0].mxu0
        %1025 = vdwg.mxu0
        %1026 = vst [vmem:[%s278] sm:$0xff] %v1021
        %s1027 = sand.u32 %s127, 1
        %s1028 = scalar_lea.sflag [#allocation4], %s1027
        %s1029 = sand.u32 %s127, 1
        %s1030 = smul.addr %s1029, 8
        %s1031 = scalar_lea.vmem [#allocation10], %s1030
        // Predicated region
        $region53: #{tpu_custom_call.1} parent=35 // pred_check
          %p1032 = pneg %p137
        $region54: #{tpu_custom_call.1} parent=35 // pred_check_branch
          %1034 = sbr.rel (%p1032) target = $region56
        $region55: #{tpu_custom_call.1} parent=35 // pred_region
          %s1036 = ssub.s32 128, 128
          %1037 = vsyncadd %s1028, %s1036
          %s1038 = smul.addr %s25, 128
          %s1039 = scalar_lea.hbm %s4, %s1038
          %s1041 = sshll.u32 %s1031, 4
          %s1042 = int_to_ptr.vmem [resolvable:$true] %s1041
          %1044 = dma.vmem_to_hbm [thread:$0]  %s1042, 128, %s1039, %s1028
        $region56: #{tpu_custom_call.1} parent=35 // pred_fallthru
          _
      $region36: #{tpu_custom_call.1} parent=5 // pred_fallthru
        _
      %p1045 = scmp.le.s32.totalorder 2, %s20
      // Predicated region
      $region57: #{tpu_custom_call.1} parent=5 // pred_check
        %p1046 = pneg %p1045
      $region58: #{tpu_custom_call.1} parent=5 // pred_check_branch
        %1048 = sbr.rel (%p1046) target = $region60
      $region59: #{tpu_custom_call.1} parent=5 // pred_region
        %s1049 = ssub.s32 %s20, 2
        // Predicated region
        $region61: #{tpu_custom_call.1} parent=59 // pred_check
          %p1050 = pneg %p143
        $region62: #{tpu_custom_call.1} parent=59 // pred_check_branch
          %1052 = sbr.rel (%p1050) target = $region64
        $region63: #{tpu_custom_call.1} parent=59 // pred_region
          %s1053 = sand.u32 %s128, 1
          %s1054 = scalar_lea.sflag [#allocation4], %s1053
          %s1055 = sand.u32 %s128, 1
          %s1056 = smul.addr %s1055, 8
          %s1057 = scalar_lea.vmem [#allocation10], %s1056
          %1058 = dma.done %s1054, 128
        $region64: #{tpu_custom_call.1} parent=59 // pred_fallthru
          _
      $region60: #{tpu_custom_call.1} parent=5 // pred_fallthru
        _
    $region6: #{tpu_custom_call.1} parent=1 // loop_footer
      %s24 = sadd.s32 1, %s20
    $region7: #{tpu_custom_call.1} parent=1 // loop_footer_branch
      %19 = sbr.rel target = $region3
    $region8: #{tpu_custom_call.1} parent=1 // loop_exit
      _
    %1059 = vsyncpa [#allocation3], 1
    %s1060 = scalar_lea.sflag [#allocation3], 1
    %1061 = vsyncpa %s1060, 1
    %1062 = vsyncpa [#allocation6], 1
    %s1063 = scalar_lea.sflag [#allocation6], 1
    %1064 = vsyncpa %s1063, 1
    %1065 = vsyncpa [#allocation9], 1
    %1066 = vsyncpa [#allocation4], 1
    %s1067 = scalar_lea.sflag [#allocation4], 1
    %1068 = vsyncpa %s1067, 1

</llo_original>
